<compile_context>
chip_gen: v7x
topology: tpu7x:2x2x1
jax: 0.10.0
libtpu: 0.0.40
codegen_flags: <defaults>
</compile_context>

<pallas_src>
import functools

import jax
import jax.numpy as jnp
from jax.experimental import pallas as pl
from jax.experimental.pallas import tpu as pltpu


def _cdiv(a, b):
    return -(-a // b)


def _round_up(x, m):
    return (x + m - 1) // m * m


def _sigmoid(z):
    # Numerically stable logistic (single EUP transcendental).
    return 0.5 * (jnp.tanh(0.5 * z) + 1.0)


def _vmem_budgets():
    """Generation-aware (vmem_limit_bytes, per-block f32-equivalent budget)."""
    cap = None
    try:
        cap = getattr(pltpu.get_tpu_info(), "vmem_capacity_bytes", None)
    except Exception:
        cap = None
    if not cap:
        cap = 64 * 1024 * 1024          # conservative: v7x per-TC VMEM
    vmem_limit = int(min(int(cap * 0.85), 112 * 1024 * 1024))
    # Leave room for double-buffered in/out blocks plus in-kernel f32 temps.
    block_budget = vmem_limit // 6
    return vmem_limit, block_budget


# ----------------------------------------------------------------------------
# Fused single-pass kernel: an (NB, C, HW) slab is resident in VMEM.
# ----------------------------------------------------------------------------
def _ca_fused_kernel(x_ref, w1t_ref, w2t_ref, o_ref, *, inv_hw):
    x = x_ref[...]                                    # (NB, C, HW) native dtype
    xf = x.astype(jnp.float32)
    pooled = jnp.sum(xf, axis=-1) * inv_hw            # (NB, C)   global avg pool
    h = jnp.maximum(
        jnp.dot(pooled, w1t_ref[...], preferred_element_type=jnp.float32), 0.0)
    s = _sigmoid(
        jnp.dot(h, w2t_ref[...], preferred_element_type=jnp.float32))  # (NB, C)
    o_ref[...] = (xf * s[:, :, None]).astype(o_ref.dtype)


# ----------------------------------------------------------------------------
# Tiled fallback (image slab exceeds the VMEM block budget):
#   pass 1 streams lane-dense (C, thw) tiles to pool + run the excitation MLP,
#   pass 2 streams the same tiles to apply the per-channel scale.
# Ragged last HW tile is masked in-kernel (no HBM pad / slice copies).
# ----------------------------------------------------------------------------
def _ca_pool_excite_kernel(x_ref, w1t_ref, w2t_ref, s_ref, acc_ref,
                           *, inv_hw, hw, thw):
    t = pl.program_id(1)

    @pl.when(t == 0)
    def _():
        acc_ref[...] = jnp.zeros_like(acc_ref)

    x = x_ref[...].astype(jnp.float32)                # (1, C, thw)
    lane = jax.lax.broadcasted_iota(jnp.int32, x.shape, 2)
    valid = (t * thw + lane) < hw                     # mask ragged last tile
    x = jnp.where(valid, x, 0.0)
    acc_ref[...] += jnp.sum(x, axis=-1)               # (1, C)

    @pl.when(t == pl.num_programs(1) - 1)
    def _():
        pooled = acc_ref[...] * inv_hw                # (1, C)
        h = jnp.maximum(
            jnp.dot(pooled, w1t_ref[...], preferred_element_type=jnp.float32),
            0.0)                                      # (1, Cr)
        s_ref[0] = _sigmoid(
            jnp.dot(h, w2t_ref[...], preferred_element_type=jnp.float32))


def _ca_scale_kernel(x_ref, s_ref, o_ref):
    s = s_ref[0]                                      # (1, C) f32, lane-dense
    o_ref[...] = (x_ref[...].astype(jnp.float32) * s[:, :, None]).astype(o_ref.dtype)


# ----------------------------------------------------------------------------
# Wrapper
# ----------------------------------------------------------------------------
def ca_layer_forward(x, w1, w2, *, force_tiled=False,
                     block_budget_bytes=None, vmem_limit_bytes=None):
    """CALayer forward.

    x:  (N, C, H, W)    NCHW activations (any float dtype; output keeps it)
    w1: (C//r, C, 1, 1) PyTorch Conv2d weight (squeeze conv, bias=False)
    w2: (C, C//r, 1, 1) PyTorch Conv2d weight (excite conv, bias=False)
    """
    N, C, H, W = x.shape
    Cr = w1.shape[0]
    HW = H * W
    inv_hw = 1.0 / float(HW)

    xr = x.reshape(N, C, HW)                           # free contiguous reshape
    w1t = w1.reshape(Cr, C).astype(jnp.float32).T      # (C, Cr) — pooled @ w1t
    w2t = w2.reshape(C, Cr).astype(jnp.float32).T      # (Cr, C) — h @ w2t

    default_vmem, default_block = _vmem_budgets()
    if vmem_limit_bytes is None:
        vmem_limit_bytes = default_vmem
    if block_budget_bytes is None:
        block_budget_bytes = default_block

    per_image_f32 = C * HW * 4                         # budget in f32-equiv bytes
    use_fused = (not force_tiled) and (per_image_f32 <= block_budget_bytes)

    if use_fused:
        # Single fused pass: one HBM read of x, one HBM write of out.
        nb = max(1, min(N, block_budget_bytes // per_image_f32))
        if N >= 2:
            nb = min(nb, _cdiv(N, 2))                  # >=2 parallel steps (v7x)
        grid0 = _cdiv(N, nb)
        out = pl.pallas_call(
            functools.partial(_ca_fused_kernel, inv_hw=inv_hw),
            out_shape=jax.ShapeDtypeStruct((N, C, HW), x.dtype),
            grid=(grid0,),
            in_specs=[pl.BlockSpec((nb, C, HW), lambda n: (n, 0, 0)),
                      pl.BlockSpec((C, Cr), lambda n: (0, 0)),
                      pl.BlockSpec((Cr, C), lambda n: (0, 0))],
            out_specs=pl.BlockSpec((nb, C, HW), lambda n: (n, 0, 0)),
            compiler_params=pltpu.CompilerParams(
                dimension_semantics=("parallel",),
                vmem_limit_bytes=vmem_limit_bytes),
        )(xr, w1t, w2t)
        return out.reshape(N, C, H, W)

    # ---- tiled two-pass fallback (per-image slab exceeds the block budget) ----
    lane_budget = max(1, block_budget_bytes // (C * 4))
    thw = max(128, (min(lane_budget, _round_up(HW, 128)) // 128) * 128)
    T = _cdiv(HW, thw)
    # TODO(synk): if C itself is enormous (> budget/128 lanes), also tile C.

    s = pl.pallas_call(
        functools.partial(_ca_pool_excite_kernel, inv_hw=inv_hw, hw=HW, thw=thw),
        out_shape=jax.ShapeDtypeStruct((N, 1, C), jnp.float32),
        grid=(N, T),
        in_specs=[pl.BlockSpec((1, C, thw), lambda n, t: (n, 0, t)),
                  pl.BlockSpec((C, Cr), lambda n, t: (0, 0)),
                  pl.BlockSpec((Cr, C), lambda n, t: (0, 0))],
        out_specs=pl.BlockSpec((1, 1, C), lambda n, t: (n, 0, 0)),
        scratch_shapes=[pltpu.VMEM((1, C), jnp.float32)],
        compiler_params=pltpu.CompilerParams(
            dimension_semantics=("parallel", "arbitrary"),
            vmem_limit_bytes=vmem_limit_bytes),
    )(xr, w1t, w2t)

    out = pl.pallas_call(
        _ca_scale_kernel,
        out_shape=jax.ShapeDtypeStruct((N, C, HW), x.dtype),
        grid=(N, T),
        in_specs=[pl.BlockSpec((1, C, thw), lambda n, t: (n, 0, t)),
                  pl.BlockSpec((1, 1, C), lambda n, t: (n, 0, 0))],
        out_specs=pl.BlockSpec((1, C, thw), lambda n, t: (n, 0, t)),
        compiler_params=pltpu.CompilerParams(
            dimension_semantics=("parallel", "parallel"),
            vmem_limit_bytes=vmem_limit_bytes),
    )(xr, s)
    return out.reshape(N, C, H, W)


# ----------------------------------------------------------------------------
if __name__ == "__main__":
    def ref_ca(x, w1, w2):
        C = x.shape[1]
        Cr = w1.shape[0]
        y = jnp.mean(x.astype(jnp.float32), axis=(2, 3))                 # (N, C)
        y = jnp.maximum(y @ w1.reshape(Cr, C).astype(jnp.float32).T, 0.0)
        y = jax.nn.sigmoid(y @ w2.reshape(C, Cr).astype(jnp.float32).T)
        return x.astype(jnp.float32) * y[:, :, None, None]

    key = jax.random.PRNGKey(0)
    kx, k1, k2, kx2 = jax.random.split(key, 4)

    N, C, red = 2, 16, 4
    w1 = 0.2 * jax.random.normal(k1, (C // red, C, 1, 1), jnp.float32)
    w2 = 0.2 * jax.random.normal(k2, (C, C // red, 1, 1), jnp.float32)

    # Case 1: fused single-pass path, f32 I/O.
    H = W = 16
    x = jax.random.normal(kx, (N, C, H, W), jnp.float32)
    out = jax.jit(ca_layer_forward)(x, w1, w2)
    jax.block_until_ready(out)
    ref = ref_ca(x, w1, w2)
    assert out.shape == (N, C, H, W) and out.dtype == x.dtype
    assert jnp.allclose(out, ref, atol=1e-5, rtol=1e-5), \
        float(jnp.max(jnp.abs(out - ref)))

    # Case 2: tiled two-pass fallback with a ragged last HW tile (in-kernel mask,
    # no HBM pad/slice).
    H2 = W2 = 18                                   # HW = 324, not a multiple of 128
    x2 = jax.random.normal(kx2, (N, C, H2, W2), jnp.float32)
    out2 = jax.jit(functools.partial(ca_layer_forward, force_tiled=True,
                                     block_budget_bytes=C * 128 * 4))(x2, w1, w2)
    jax.block_until_ready(out2)
    ref2 = ref_ca(x2, w1, w2)
    assert out2.shape == (N, C, H2, W2)
    assert jnp.allclose(out2, ref2, atol=1e-5, rtol=1e-5), \
        float(jnp.max(jnp.abs(out2 - ref2)))

    # Case 3: bf16 I/O stays bf16 through HBM (f32 math in-kernel only).
    xb = x.astype(jnp.bfloat16)
    outb = jax.jit(ca_layer_forward)(xb, w1, w2)
    jax.block_until_ready(outb)
    refb = ref_ca(xb, w1, w2)
    assert outb.dtype == jnp.bfloat16
    assert jnp.allclose(outb.astype(jnp.float32), refb, atol=2e-2, rtol=2e-2)

    print("KERNEL_OK")
</pallas_src>

<mosaic_0001>
module attributes {stable_mosaic.version = 11 : i64} {
  func.func @_ca_fused_kernel(%arg0: i32, %arg1: memref<1x16x256xf32, #tpu.memory_space<vmem>>, %arg2: memref<16x4xf32, #tpu.memory_space<vmem>>, %arg3: memref<4x16xf32, #tpu.memory_space<vmem>>, %arg4: memref<1x16x256xf32, #tpu.memory_space<vmem>>) attributes {dimension_semantics = [#tpu.dimension_semantics<parallel>], iteration_bounds = array<i64: 2>, scalar_prefetch = 0 : i64, scratch_operands = 0 : i64, tpu.core_type = #tpu.core_type<tc>, window_params = [{transform_indices = @transform_0, window_bounds = array<i64: 1, 16, 256>}, {pipeline_mode = #tpu.pipeline_mode<synchronous>, transform_indices = @transform_1, window_bounds = array<i64: 16, 4>}, {pipeline_mode = #tpu.pipeline_mode<synchronous>, transform_indices = @transform_2, window_bounds = array<i64: 4, 16>}, {transform_indices = @transform_3, window_bounds = array<i64: 1, 16, 256>}]} {
    %c0 = arith.constant 0 : index
    %c0_0 = arith.constant 0 : index
    %c0_1 = arith.constant 0 : index
    %0 = vector.load %arg1[%c0, %c0_0, %c0_1] : memref<1x16x256xf32, #tpu.memory_space<vmem>>, vector<1x16x256xf32>
    %cst = arith.constant dense<0.000000e+00> : vector<1x16xf32>
    %1 = vector.multi_reduction <add>, %0, %cst [2] : vector<1x16x256xf32> to vector<1x16xf32>
    %cst_2 = arith.constant 3.906250e-03 : f32
    %2 = vector.broadcast %cst_2 : f32 to vector<1x16xf32>
    %3 = arith.mulf %1, %2 : vector<1x16xf32>
    %c0_3 = arith.constant 0 : index
    %c0_4 = arith.constant 0 : index
    %4 = vector.load %arg2[%c0_3, %c0_4] : memref<16x4xf32, #tpu.memory_space<vmem>>, vector<16x4xf32>
    %cst_5 = arith.constant dense<0.000000e+00> : vector<1x4xf32>
    %5 = tpu.matmul %3, %4, %cst_5 {dimension_numbers = #tpu.dot_dimension_numbers<[1], [0], [0], [1], [0, 0, 1, 1], [], []>} : vector<1x16xf32>, vector<16x4xf32>, vector<1x4xf32> -> vector<1x4xf32>
    %cst_6 = arith.constant 0.000000e+00 : f32
    %6 = vector.broadcast %cst_6 : f32 to vector<1x4xf32>
    %7 = arith.maximumf %5, %6 : vector<1x4xf32>
    %c0_7 = arith.constant 0 : index
    %c0_8 = arith.constant 0 : index
    %8 = vector.load %arg3[%c0_7, %c0_8] : memref<4x16xf32, #tpu.memory_space<vmem>>, vector<4x16xf32>
    %cst_9 = arith.constant dense<0.000000e+00> : vector<1x16xf32>
    %9 = tpu.matmul %7, %8, %cst_9 {dimension_numbers = #tpu.dot_dimension_numbers<[1], [0], [0], [1], [0, 0, 1, 1], [], []>} : vector<1x4xf32>, vector<4x16xf32>, vector<1x16xf32> -> vector<1x16xf32>
    %cst_10 = arith.constant 5.000000e-01 : f32
    %10 = vector.broadcast %cst_10 : f32 to vector<1x16xf32>
    %11 = arith.mulf %10, %9 : vector<1x16xf32>
    %12 = math.tanh %11 : vector<1x16xf32>
    %cst_11 = arith.constant 1.000000e+00 : f32
    %13 = vector.broadcast %cst_11 : f32 to vector<1x16xf32>
    %14 = arith.addf %12, %13 : vector<1x16xf32>
    %cst_12 = arith.constant 5.000000e-01 : f32
    %15 = vector.broadcast %cst_12 : f32 to vector<1x16xf32>
    %16 = arith.mulf %15, %14 : vector<1x16xf32>
    %17 = vector.shape_cast %16 : vector<1x16xf32> to vector<1x16x1xf32>
    %18 = vector.broadcast %17 : vector<1x16x1xf32> to vector<1x16x256xf32>
    %19 = arith.mulf %0, %18 : vector<1x16x256xf32>
    %c0_13 = arith.constant 0 : index
    %c0_14 = arith.constant 0 : index
    %c0_15 = arith.constant 0 : index
    %20 = vector.load %arg4[%c0_13, %c0_14, %c0_15] : memref<1x16x256xf32, #tpu.memory_space<vmem>>, vector<1x16x256xf32>
    tpu.vector_store %arg4[%c0_13, %c0_14, %c0_15], %19 {strides = array<i32>} : memref<1x16x256xf32, #tpu.memory_space<vmem>>, vector<1x16x256xf32>,
    return
  }
  func.func @transform_0(%arg0: i32) -> (i32, i32, i32) {
    %c0_i32 = arith.constant 0 : i32
    %c0_i32_0 = arith.constant 0 : i32
    %c0_i32_1 = arith.constant 0 : i32
    return %arg0, %c0_i32, %c0_i32_0 : i32, i32, i32
  }
  func.func @transform_1(%arg0: i32) -> (i32, i32) {
    %c0_i32 = arith.constant 0 : i32
    %c0_i32_0 = arith.constant 0 : i32
    %c0_i32_1 = arith.constant 0 : i32
    return %c0_i32, %c0_i32_0 : i32, i32
  }
  func.func @transform_2(%arg0: i32) -> (i32, i32) {
    %c0_i32 = arith.constant 0 : i32
    %c0_i32_0 = arith.constant 0 : i32
    %c0_i32_1 = arith.constant 0 : i32
    return %c0_i32, %c0_i32_0 : i32, i32
  }
  func.func @transform_3(%arg0: i32) -> (i32, i32, i32) {
    %c0_i32 = arith.constant 0 : i32
    %c0_i32_0 = arith.constant 0 : i32
    %c0_i32_1 = arith.constant 0 : i32
    return %arg0, %c0_i32, %c0_i32_0 : i32, i32, i32
  }
}

</mosaic_0001>

<llo_original>
// kernel: ca_layer_forward.1
$region0: #{ca_layer_forward.1}
  #allocation0 [shape = 'u32[]', space=smem, size = 0x4, offset = 0x4, fixed_abs, tag = 'smem constant byte address 0x4 - core index']
  #allocation1 [shape = 'u32[144,128]{1,0:T(1,128)}', space=vmem, size = 0x12000, scoped, tag = 'internal scratch']
  %s0 = inlined_call_operand.vmem [shape: f32[2,16,256], index: 0, kind: input, shape index: {}]
  %s1 = inlined_call_operand.vmem [shape: f32[16,4], index: 1, kind: input, shape index: {}]
  %s2 = inlined_call_operand.vmem [shape: f32[4,16], index: 2, kind: input, shape index: {}]
  %s3 = inlined_call_operand.vmem [shape: f32[2,16,256], index: 3, kind: output, shape index: {}]
  %s4 = sld [smem:[#allocation0]]
  $region45: #{ca_layer_forward.1} parent=0
    _
  %s6 = ssub.s32 1, %s4
  %s7 = scalar_select 0, %s6, %s4
  loop: start=0, step=1, limit=4
  $region2: #{ca_layer_forward.1} parent=0 // loop_pre_header
    _
  $region3: #{ca_layer_forward.1} parent=0 // loop_header
    %s9 = sphi 0, %s13
    %p10 = scmp.ge.s32.totalorder %s9, 4
    %s19 = sphi 0, %s21
    %s22 = sphi 0, %s19
    %s23 = sphi 0, %s22
    %s39 = sphi 0, %s23
    %s43 = sphi 0, %s43
    %s45 = sphi 0, %s43
    %s46 = sphi 0, %s45
    %s60 = sphi 0, %s46
    %s64 = sphi 0, %s64
    %s66 = sphi 0, %s64
    %s67 = sphi 0, %s66
    %s81 = sphi 0, %s67
    %s87 = sphi 0, %s89
    %s90 = sphi 0, %s87
    %s91 = sphi 0, %s90
    %s107 = sphi 0, %s91
  $region4: #{ca_layer_forward.1} parent=0 // loop_header_branch
    %12 = sbr.rel (%p10) target = $region8
  $region5: #{ca_layer_forward.1} parent=0 // loop_body
    %s14 = ssub.s32 %s9, 1
    %s15 = ssub.s32 %s9, 2
    %s16 = sadd.s32 %s9, 1
    %s17 = ssub.s32 %s9, %s16
    %p18 = scmp.eq.s32.totalorder %s17, 0
    %s20 = sadd.s32 %s19, 1
    %s21 = scalar_select %p18, %s19, %s20
    %p24 = pneg %p18
    %p25 = scmp.eq.s32.totalorder %s9, 1
    %p26 = por %p24, %p25
    %p27 = scmp.ne.s32.totalorder %s19, %s22
    %p28 = scmp.eq.s32.totalorder %s9, 0
    %p29 = por %p27, %p28
    %p30 = scmp.ne.s32.totalorder %s19, %s22
    %p31 = scmp.eq.s32.totalorder %s14, 1
    %p32 = por %p30, %p31
    %p33 = scmp.ne.s32.totalorder %s22, %s23
    %p34 = scmp.eq.s32.totalorder %s14, 0
    %p35 = por %p33, %p34
    %p36 = scmp.ne.s32.totalorder %s22, %s23
    %p37 = scmp.eq.s32.totalorder %s15, 1
    %p38 = por %p36, %p37
    %p40 = scmp.ne.s32.totalorder %s23, %s39
    %p41 = scmp.eq.s32.totalorder %s15, 0
    %p42 = por %p40, %p41
    %s44 = sadd.s32 %s43, 1
    %p47 = scmp.eq.s32.totalorder %s9, 1
    %p48 = scmp.ne.s32.totalorder %s43, %s45
    %p49 = scmp.eq.s32.totalorder %s9, 0
    %p50 = por %p48, %p49
    %p51 = scmp.ne.s32.totalorder %s43, %s45
    %p52 = scmp.eq.s32.totalorder %s14, 1
    %p53 = por %p51, %p52
    %p54 = scmp.ne.s32.totalorder %s45, %s46
    %p55 = scmp.eq.s32.totalorder %s14, 0
    %p56 = por %p54, %p55
    %p57 = scmp.ne.s32.totalorder %s45, %s46
    %p58 = scmp.eq.s32.totalorder %s15, 1
    %p59 = por %p57, %p58
    %p61 = scmp.ne.s32.totalorder %s46, %s60
    %p62 = scmp.eq.s32.totalorder %s15, 0
    %p63 = por %p61, %p62
    %s65 = sadd.s32 %s64, 1
    %p68 = scmp.eq.s32.totalorder %s9, 1
    %p69 = scmp.ne.s32.totalorder %s64, %s66
    %p70 = scmp.eq.s32.totalorder %s9, 0
    %p71 = por %p69, %p70
    %p72 = scmp.ne.s32.totalorder %s64, %s66
    %p73 = scmp.eq.s32.totalorder %s14, 1
    %p74 = por %p72, %p73
    %p75 = scmp.ne.s32.totalorder %s66, %s67
    %p76 = scmp.eq.s32.totalorder %s14, 0
    %p77 = por %p75, %p76
    %p78 = scmp.ne.s32.totalorder %s66, %s67
    %p79 = scmp.eq.s32.totalorder %s15, 1
    %p80 = por %p78, %p79
    %p82 = scmp.ne.s32.totalorder %s67, %s81
    %p83 = scmp.eq.s32.totalorder %s15, 0
    %p84 = por %p82, %p83
    %s85 = ssub.s32 %s9, %s16
    %p86 = scmp.eq.s32.totalorder %s85, 0
    %s88 = sadd.s32 %s87, 1
    %s89 = scalar_select %p86, %s87, %s88
    %p92 = pneg %p86
    %p93 = scmp.eq.s32.totalorder %s9, 1
    %p94 = por %p92, %p93
    %p95 = scmp.ne.s32.totalorder %s87, %s90
    %p96 = scmp.eq.s32.totalorder %s9, 0
    %p97 = por %p95, %p96
    %p98 = scmp.ne.s32.totalorder %s87, %s90
    %p99 = scmp.eq.s32.totalorder %s14, 1
    %p100 = por %p98, %p99
    %p101 = scmp.ne.s32.totalorder %s90, %s91
    %p102 = scmp.eq.s32.totalorder %s14, 0
    %p103 = por %p101, %p102
    %p104 = scmp.ne.s32.totalorder %s90, %s91
    %p105 = scmp.eq.s32.totalorder %s15, 1
    %p106 = por %p104, %p105
    %p108 = scmp.ne.s32.totalorder %s91, %s107
    %p109 = scmp.eq.s32.totalorder %s15, 0
    %p110 = por %p108, %p109
    %p111 = scmp.le.s32.totalorder 1, %s9
    %p112 = scmp.lt.s32.totalorder %s9, 3
    %p113 = pnand %p111, %p112
    %p114 = pneg %p113
    // Predicated region
    $region9: #{ca_layer_forward.1} parent=5 // pred_check
      _
    $region10: #{ca_layer_forward.1} parent=5 // pred_check_branch
      %116 = sbr.rel (%p113) target = $region12
    $region11: #{ca_layer_forward.1} parent=5 // pred_region
      %s117 = ssub.s32 %s9, 1
      // Predicated region
      $region13: #{ca_layer_forward.1} parent=11 // pred_check
        %p118 = pneg %p56
      $region14: #{ca_layer_forward.1} parent=11 // pred_check_branch
        %120 = sbr.rel (%p118) target = $region16
      $region15: #{ca_layer_forward.1} parent=11 // pred_region
        _
      $region16: #{ca_layer_forward.1} parent=11 // pred_fallthru
        _
      // Predicated region
      $region17: #{ca_layer_forward.1} parent=11 // pred_check
        %p121 = pneg %p77
      $region18: #{ca_layer_forward.1} parent=11 // pred_check_branch
        %123 = sbr.rel (%p121) target = $region20
      $region19: #{ca_layer_forward.1} parent=11 // pred_region
        _
      $region20: #{ca_layer_forward.1} parent=11 // pred_fallthru
        _
    $region12: #{ca_layer_forward.1} parent=5 // pred_fallthru
      _
    %p124 = scmp.lt.s32.totalorder %s9, 2
    // Predicated region
    $region21: #{ca_layer_forward.1} parent=5 // pred_check
      %p125 = pneg %p124
    $region22: #{ca_layer_forward.1} parent=5 // pred_check_branch
      %127 = sbr.rel (%p125) target = $region24
    $region23: #{ca_layer_forward.1} parent=5 // pred_region
      // Predicated region
      $region25: #{ca_layer_forward.1} parent=23 // pred_check
        %p128 = pneg %p29
      $region26: #{ca_layer_forward.1} parent=23 // pred_check_branch
        %130 = sbr.rel (%p128) target = $region28
      $region27: #{ca_layer_forward.1} parent=23 // pred_region
        %p131 = scmp.lt.s32.totalorder %s9, 1
        %s132 = scalar_select %p131, %s9, 1
        %s133 = smul.addr %s132, 4
        %s134 = smul.addr %s133, 8
        %s135 = scalar_lea.vmem %s0, %s134
      $region28: #{ca_layer_forward.1} parent=23 // pred_fallthru
        _
    $region24: #{ca_layer_forward.1} parent=5 // pred_fallthru
      _
    %p136 = scmp.le.s32.totalorder 1, %s9
    %p137 = scmp.lt.s32.totalorder %s9, 3
    %p138 = pnand %p136, %p137
    %p139 = pneg %p138
    // Predicated region
    $region29: #{ca_layer_forward.1} parent=5 // pred_check
      _
    $region30: #{ca_layer_forward.1} parent=5 // pred_check_branch
      %141 = sbr.rel (%p138) target = $region32
    $region31: #{ca_layer_forward.1} parent=5 // pred_region
      %s142 = ssub.s32 %s9, 1
      %p143 = scmp.lt.s32.totalorder %s14, 1
      %s144 = scalar_select %p143, %s14, 1
      %s145 = smul.addr %s144, 4
      %s146 = smul.addr %s145, 8
      %s147 = scalar_lea.vmem %s0, %s146
      %p148 = pneg %p35
      %p149 = pneg %p32
      %p150 = pneg %p56
      %p151 = pneg %p53
      %p152 = pneg %p77
      %p153 = pneg %p74
      %p154 = pneg %p103
      %p155 = pneg %p100
      %p156 = scmp.lt.s32.totalorder %s14, 1
      %s157 = scalar_select %p156, %s14, 1
      %s158 = smul.addr %s157, 4
      %s159 = smul.addr %s158, 8
      %s160 = scalar_lea.vmem %s3, %s159
      %p161 = scmp.lt.s32.totalorder %s14, 1
      %s162 = scalar_select %p161, %s14, 1
      %s163 = smul.addr %s162, 4
      %s164 = smul.addr %s163, 8
      %s165 = scalar_lea.vmem %s0, %s164
      %p166 = scmp.lt.s32.totalorder %s14, 1
      %s167 = scalar_select %p166, %s14, 1
      %s168 = smul.addr %s167, 4
      %s169 = smul.addr %s168, 8
      %s170 = scalar_lea.vmem %s3, %s169
      %v171 = vld [vmem:[%s165] sm:$0xff]
      %v172 = vld [vmem:[%s165 + $0x8] sm:$0xff]
      %v173 = vld [vmem:[%s165 + $0x10] sm:$0xff]
      %v174 = vld [vmem:[%s165 + $0x18] sm:$0xff]
      %v175 = vadd.f32 %v171, %v172
      %176 = vadd.xlane.f32.xlu0 %v175
      %v177 = vpop.xlane.xlu0 %176
      %v178 = vadd.f32 %v173, %v174
      %179 = vadd.xlane.f32.xlu0 %v178
      %v180 = vpop.xlane.xlu0 %179
      %v181 = vmul.f32 %v177, 0.00390625
      %v182 = vmul.f32 %v180, 0.00390625
      %v183 = vld [vmem:[%s1] sm:$0xff]
      %v184 = vld [vmem:[%s1 + $0x8] sm:$0xff]
      %v187 = vlaneseq
      %v188 = vand.u32 %v187, 127
      %v189 = vlaneseq
      %v190 = vshrl.u32 %v189, 7
      %v191 = vsub.s32 %v188, %v190
      %v192 = vrot.slane %v181, %v191
      %v193 = vadd.s32 %v188, 4294967288
      %v194 = vlaneseq
      %v195 = vshrl.u32 %v194, 7
      %v196 = vsub.s32 %v193, %v195
      %v197 = vrot.slane %v182, %v196
      %vm198 = vcmask 130112
      %v199 = vsel %vm198, %v197, %v192
      %vm200 = vcmask 130048
      %v201 = vsel %vm200, %v199, 0
      %203 = vmatprep.subr.mxu0 0.0
      %204 = vmatpush1.msra.mxu0 %v183
      %205 = vmatprep.subr.mxu0 0.0
      %206 = vmatpush1.msra.mxu0 %v184
      %207 = vmatprep.subr.mxu0 0.0
      %208 = vmatpush1.msra.mxu0 0.0
      %209 = vmatprep.subr.mxu0 0.0
      %210 = vmatpush1.msra.mxu0 0.0
      %211 = vmatprep.subr.mxu0 0.0
      %212 = vmatpush1.msra.mxu0 0.0
      %213 = vmatprep.subr.mxu0 0.0
      %214 = vmatpush1.msra.mxu0 0.0
      %215 = vmatprep.subr.mxu0 0.0
      %216 = vmatpush1.msra.mxu0 0.0
      %217 = vmatprep.subr.mxu0 0.0
      %218 = vmatpush1.msra.mxu0 0.0
      %219 = vmatprep.subr.mxu0 0.0
      %220 = vmatpush1.msra.mxu0 0.0
      %221 = vmatprep.subr.mxu0 0.0
      %222 = vmatpush1.msra.mxu0 0.0
      %223 = vmatprep.subr.mxu0 0.0
      %224 = vmatpush1.msra.mxu0 0.0
      %225 = vmatprep.subr.mxu0 0.0
      %226 = vmatpush1.msra.mxu0 0.0
      %227 = vmatprep.subr.mxu0 0.0
      %228 = vmatpush1.msra.mxu0 0.0
      %229 = vmatprep.subr.mxu0 0.0
      %230 = vmatpush1.msra.mxu0 0.0
      %231 = vmatprep.subr.mxu0 0.0
      %232 = vmatpush1.msra.mxu0 0.0
      %233 = vmatprep.subr.mxu0 0.0
      %234 = vmatpush1.msra.mxu0 0.0
      %235 = vmatprep.subr.mxu0 0.0
      %236 = vmatpush1.msra.mxu0 0.0
      %237 = vmatprep.subr.mxu0 0.0
      %238 = vmatpush1.msra.mxu0 0.0
      %239 = vmatprep.subr.mxu0 0.0
      %240 = vmatpush1.msra.mxu0 0.0
      %241 = vmatprep.subr.mxu0 0.0
      %242 = vmatpush1.msra.mxu0 0.0
      %243 = vmatprep.subr.mxu0 0.0
      %244 = vmatpush1.msra.mxu0 0.0
      %245 = vmatprep.subr.mxu0 0.0
      %246 = vmatpush1.msra.mxu0 0.0
      %247 = vmatprep.subr.mxu0 0.0
      %248 = vmatpush1.msra.mxu0 0.0
      %249 = vmatprep.subr.mxu0 0.0
      %250 = vmatpush1.msra.mxu0 0.0
      %251 = vmatprep.subr.mxu0 0.0
      %252 = vmatpush1.msra.mxu0 0.0
      %253 = vmatprep.subr.mxu0 0.0
      %254 = vmatpush1.msra.mxu0 0.0
      %255 = vmatprep.subr.mxu0 0.0
      %256 = vmatpush1.msra.mxu0 0.0
      %257 = vmatprep.subr.mxu0 0.0
      %258 = vmatpush1.msra.mxu0 0.0
      %259 = vmatprep.subr.mxu0 0.0
      %260 = vmatpush1.msra.mxu0 0.0
      %261 = vmatprep.subr.mxu0 0.0
      %262 = vmatpush1.msra.mxu0 0.0
      %263 = vmatprep.subr.mxu0 0.0
      %264 = vmatpush1.msra.mxu0 0.0
      %265 = vmatprep.subr.mxu0 0.0
      %266 = vmatpush1.msra.mxu0 0.0
      %267 = vmatprep.mubr.f32.mxu0 0.0
      %268 = vmatmul.mubr.f32.gmra.mrb[0].mxu0 %v201
      %v269 = vpop.f32.mrb[0].mxu0
      %v270 = vadd.f32 0.0, %v269
      %v271 = vpop.f32.mrb[0].mxu0
      %272 = vdwg.mxu0
      %v273 = vmax.f32 %v270, 0.0
      %v274 = vld [vmem:[%s2] sm:$0xf]
      %vm275 = vcmask 31744
      %v277 = vsel %vm275, %v273, 0
      %vm279 = vcmask 1043456
      %v281 = vsel %vm279, %v274, 0
      %283 = vmatprep.subr.mxu0 0.0
      %284 = vmatpush1.msra.mxu0 %v281
      %285 = vmatprep.subr.mxu0 0.0
      %286 = vmatpush1.msra.mxu0 0.0
      %287 = vmatprep.subr.mxu0 0.0
      %288 = vmatpush1.msra.mxu0 0.0
      %289 = vmatprep.subr.mxu0 0.0
      %290 = vmatpush1.msra.mxu0 0.0
      %291 = vmatprep.subr.mxu0 0.0
      %292 = vmatpush1.msra.mxu0 0.0
      %293 = vmatprep.subr.mxu0 0.0
      %294 = vmatpush1.msra.mxu0 0.0
      %295 = vmatprep.subr.mxu0 0.0
      %296 = vmatpush1.msra.mxu0 0.0
      %297 = vmatprep.subr.mxu0 0.0
      %298 = vmatpush1.msra.mxu0 0.0
      %299 = vmatprep.subr.mxu0 0.0
      %300 = vmatpush1.msra.mxu0 0.0
      %301 = vmatprep.subr.mxu0 0.0
      %302 = vmatpush1.msra.mxu0 0.0
      %303 = vmatprep.subr.mxu0 0.0
      %304 = vmatpush1.msra.mxu0 0.0
      %305 = vmatprep.subr.mxu0 0.0
      %306 = vmatpush1.msra.mxu0 0.0
      %307 = vmatprep.subr.mxu0 0.0
      %308 = vmatpush1.msra.mxu0 0.0
      %309 = vmatprep.subr.mxu0 0.0
      %310 = vmatpush1.msra.mxu0 0.0
      %311 = vmatprep.subr.mxu0 0.0
      %312 = vmatpush1.msra.mxu0 0.0
      %313 = vmatprep.subr.mxu0 0.0
      %314 = vmatpush1.msra.mxu0 0.0
      %315 = vmatprep.subr.mxu0 0.0
      %316 = vmatpush1.msra.mxu0 0.0
      %317 = vmatprep.subr.mxu0 0.0
      %318 = vmatpush1.msra.mxu0 0.0
      %319 = vmatprep.subr.mxu0 0.0
      %320 = vmatpush1.msra.mxu0 0.0
      %321 = vmatprep.subr.mxu0 0.0
      %322 = vmatpush1.msra.mxu0 0.0
      %323 = vmatprep.subr.mxu0 0.0
      %324 = vmatpush1.msra.mxu0 0.0
      %325 = vmatprep.subr.mxu0 0.0
      %326 = vmatpush1.msra.mxu0 0.0
      %327 = vmatprep.subr.mxu0 0.0
      %328 = vmatpush1.msra.mxu0 0.0
      %329 = vmatprep.subr.mxu0 0.0
      %330 = vmatpush1.msra.mxu0 0.0
      %331 = vmatprep.subr.mxu0 0.0
      %332 = vmatpush1.msra.mxu0 0.0
      %333 = vmatprep.subr.mxu0 0.0
      %334 = vmatpush1.msra.mxu0 0.0
      %335 = vmatprep.subr.mxu0 0.0
      %336 = vmatpush1.msra.mxu0 0.0
      %337 = vmatprep.subr.mxu0 0.0
      %338 = vmatpush1.msra.mxu0 0.0
      %339 = vmatprep.subr.mxu0 0.0
      %340 = vmatpush1.msra.mxu0 0.0
      %341 = vmatprep.subr.mxu0 0.0
      %342 = vmatpush1.msra.mxu0 0.0
      %343 = vmatprep.subr.mxu0 0.0
      %344 = vmatpush1.msra.mxu0 0.0
      %345 = vmatprep.subr.mxu0 0.0
      %346 = vmatpush1.msra.mxu0 0.0
      %347 = vmatprep.mubr.f32.mxu0 0.0
      %348 = vmatmul.mubr.f32.gmra.mrb[0].mxu0 %v277
      %v349 = vpop.f32.mrb[0].mxu0
      %v350 = vadd.f32 0.0, %v349
      %v351 = vpop.f32.mrb[0].mxu0
      %352 = vdwg.mxu0
      %v353 = vmul.f32 %v350, 0.5
      %v354 = vtanh.pop %v353
      %v355 = vadd.f32 %v354, 1.0
      %v356 = vmul.f32 %v355, 0.5
      %v357 = vlaneseq
      %v358 = vshrl.u32 %v357, 7
      %v359 = vsub.s32 0, %v358
      %v360 = vrot.slane %v356, %v359
      %362 = vbcast.lane.b32.xlu0 %v360, 256
      %v363 = vpop.permute.xlu0 %362
      %s365 = sor.u32 256, 8
      %366 = vbcast.lane.b32.xlu0 %v360, %s365
      %v367 = vpop.permute.xlu0 %366
      %v368 = vmul.f32 %v171, %v363
      %v369 = vmul.f32 %v172, %v363
      %v370 = vmul.f32 %v173, %v367
      %v371 = vmul.f32 %v174, %v367
      %372 = vst [vmem:[%s170] sm:$0xff] %v368
      %373 = vst [vmem:[%s170 + $0x8] sm:$0xff] %v369
      %374 = vst [vmem:[%s170 + $0x10] sm:$0xff] %v370
      %375 = vst [vmem:[%s170 + $0x18] sm:$0xff] %v371
      %p376 = scmp.lt.s32.totalorder %s14, 1
      %s377 = scalar_select %p376, %s14, 1
      %s378 = smul.addr %s377, 4
      %s379 = smul.addr %s378, 8
      %s380 = scalar_lea.vmem %s3, %s379
      // Predicated region
      $region33: #{ca_layer_forward.1} parent=31 // pred_check
        %p381 = pneg %p100
      $region34: #{ca_layer_forward.1} parent=31 // pred_check_branch
        %383 = sbr.rel (%p381) target = $region36
      $region35: #{ca_layer_forward.1} parent=31 // pred_region
        _
      $region36: #{ca_layer_forward.1} parent=31 // pred_fallthru
        _
    $region32: #{ca_layer_forward.1} parent=5 // pred_fallthru
      _
    %p384 = scmp.le.s32.totalorder 2, %s9
    // Predicated region
    $region37: #{ca_layer_forward.1} parent=5 // pred_check
      %p385 = pneg %p384
    $region38: #{ca_layer_forward.1} parent=5 // pred_check_branch
      %387 = sbr.rel (%p385) target = $region40
    $region39: #{ca_layer_forward.1} parent=5 // pred_region
      %s388 = ssub.s32 %s9, 2
      // Predicated region
      $region41: #{ca_layer_forward.1} parent=39 // pred_check
        %p389 = pneg %p106
      $region42: #{ca_layer_forward.1} parent=39 // pred_check_branch
        %391 = sbr.rel (%p389) target = $region44
      $region43: #{ca_layer_forward.1} parent=39 // pred_region
        %p392 = scmp.lt.s32.totalorder %s15, 1
        %s393 = scalar_select %p392, %s15, 1
        %s394 = smul.addr %s393, 4
        %s395 = smul.addr %s394, 8
        %s396 = scalar_lea.vmem %s3, %s395
      $region44: #{ca_layer_forward.1} parent=39 // pred_fallthru
        _
    $region40: #{ca_layer_forward.1} parent=5 // pred_fallthru
      _
  $region6: #{ca_layer_forward.1} parent=0 // loop_footer
    %s13 = sadd.s32 1, %s9
  $region7: #{ca_layer_forward.1} parent=0 // loop_footer_branch
    %8 = sbr.rel target = $region3
  $region8: #{ca_layer_forward.1} parent=0 // loop_exit
    _

</llo_original>
